<compile_context>
chip_gen: v5e
topology: v5e:2x2
jax: 0.10.0
libtpu: 0.0.40
codegen_flags: <defaults>
</compile_context>

<pallas_src>
import functools

import jax
import jax.numpy as jnp
from jax.experimental import pallas as pl
from jax.experimental.pallas import tpu as pltpu


def _round_up(x, m):
    return ((x + m - 1) // m) * m


_RESIDENT_WEIGHT_BYTES = 8 * 2**20   # bf16 weight slab kept VMEM-resident
_VMEM_BUDGET = 40 * 2**20            # conservative for v7x (64 MiB / TC)


# ----------------------------- Pallas kernels -------------------------------

def _conv_mm_resident_kernel(p_ref, w_ref, scale_ref, shift_ref, o_ref,
                             *, apply_relu: bool):
    # p_ref:     (tm, K)   bf16 im2col patch tile
    # w_ref:     (K, Cp)   bf16 flattened conv weight (VMEM-resident, one DMA)
    # scale_ref: (1, Cp)   f32 fused scale
    # shift_ref: (1, Cp)   f32 fused shift (conv bias folded in)
    # o_ref:     (tm, Cp)  bf16 output tile
    acc = jnp.dot(p_ref[...], w_ref[...], preferred_element_type=jnp.float32)
    acc = acc * scale_ref[...] + shift_ref[...]
    if apply_relu:
        acc = jnp.maximum(acc, 0.0)
    o_ref[...] = acc.astype(o_ref.dtype)


def _conv_mm_ktiled_kernel(p_ref, w_ref, scale_ref, shift_ref, o_ref,
                           *, apply_relu: bool):
    # Large-K path: o_ref (f32, block-resident across the K axis) is the
    # accumulator; scale/shift/relu applied on the last K step.
    k = pl.program_id(1)

    @pl.when(k == 0)
    def _():
        o_ref[...] = jnp.zeros_like(o_ref)

    o_ref[...] += jnp.dot(p_ref[...], w_ref[...],
                          preferred_element_type=jnp.float32)

    @pl.when(k == pl.num_programs(1) - 1)
    def _():
        acc = o_ref[...] * scale_ref[...] + shift_ref[...]
        if apply_relu:
            acc = jnp.maximum(acc, 0.0)
        o_ref[...] = acc


# ------------------------------ matmul driver -------------------------------

def _conv_matmul(patches, w_pad, scale, shift, *, apply_relu, cout):
    """patches: (M, K) bf16; w_pad: (K, Cp) bf16; scale/shift: (1, Cp) f32."""
    M, K = patches.shape
    K_w, Cp = w_pad.shape
    assert K == K_w, (K, K_w)

    resident = (K * Cp * 2) <= _RESIDENT_WEIGHT_BYTES

    if resident:
        tk = K                               # full-K block, no padding
        out_dtype = jnp.bfloat16             # halve HBM writeback of Cp slab
        fixed = 2 * K * Cp * 2 + 4 * Cp * 4  # weight (2 bufs) + scale/shift
        per_row = 2 * K * 2 + 2 * Cp * 2     # patch (2 bufs) + out (2 bufs)
    else:
        tk = 512                             # K already padded to 512 multiple
        out_dtype = jnp.float32              # output block is the accumulator
        fixed = 2 * tk * Cp * 2 + 4 * Cp * 4
        per_row = 2 * tk * 2 + Cp * 4        # patch (2 bufs) + resident out

    # Row tile: as large as the VMEM budget allows (amortize ~0.35us/step and
    # weight re-streams), but >=2 M-steps when possible so the parallel axis
    # can split across v7x's two TensorCores.
    M_align = _round_up(M, 128)
    tm = min(1024, M_align)
    while tm > 128 and fixed + tm * per_row > _VMEM_BUDGET:
        tm -= 128
    if M_align // tm < 2 and M_align >= 256:
        tm = max(128, ((M_align // 2) // 128) * 128)
    M_pad = _round_up(M, tm)

    if M_pad != M:
        patches = jnp.pad(patches, ((0, M_pad - M), (0, 0)))

    est = fixed + tm * per_row
    vmem_limit = int(min(48 * 2**20, max(est + (4 << 20), 32 * 2**20)))

    if resident:
        kernel = functools.partial(_conv_mm_resident_kernel,
                                   apply_relu=apply_relu)
        out = pl.pallas_call(
            kernel,
            out_shape=jax.ShapeDtypeStruct((M_pad, Cp), out_dtype),
            grid_spec=pltpu.PrefetchScalarGridSpec(
                num_scalar_prefetch=0,
                grid=(M_pad // tm,),
                in_specs=[
                    pl.BlockSpec((tm, K), lambda i: (i, 0)),
                    pl.BlockSpec((K, Cp), lambda i: (0, 0)),   # resident
                    pl.BlockSpec((1, Cp), lambda i: (0, 0)),
                    pl.BlockSpec((1, Cp), lambda i: (0, 0)),
                ],
                out_specs=pl.BlockSpec((tm, Cp), lambda i: (i, 0)),
            ),
            compiler_params=pltpu.CompilerParams(
                dimension_semantics=("parallel",),
                vmem_limit_bytes=vmem_limit),
        )(patches, w_pad, scale, shift)
    else:
        kernel = functools.partial(_conv_mm_ktiled_kernel,
                                   apply_relu=apply_relu)
        out = pl.pallas_call(
            kernel,
            out_shape=jax.ShapeDtypeStruct((M_pad, Cp), out_dtype),
            grid_spec=pltpu.PrefetchScalarGridSpec(
                num_scalar_prefetch=0,
                grid=(M_pad // tm, K // tk),
                in_specs=[
                    pl.BlockSpec((tm, tk), lambda i, k: (i, k)),
                    pl.BlockSpec((tk, Cp), lambda i, k: (k, 0)),
                    pl.BlockSpec((1, Cp), lambda i, k: (0, 0)),
                    pl.BlockSpec((1, Cp), lambda i, k: (0, 0)),
                ],
                out_specs=pl.BlockSpec((tm, Cp), lambda i, k: (i, 0)),
            ),
            compiler_params=pltpu.CompilerParams(
                dimension_semantics=("parallel", "arbitrary"),
                vmem_limit_bytes=vmem_limit),
        )(patches, w_pad, scale, shift)

    return out[:M, :cout]


# ------------------------------ im2col (NHWC) -------------------------------

def _im2col_nhwc(x_nhwc, kh, kw, s, p, d):
    # x_nhwc: (N, H, W, C) -> patches (N*Ho*Wo, kh*kw*C); feature order is
    # (ki, kj, c) with c fastest (channels already last -> no big transpose).
    N, H, W, C = x_nhwc.shape
    Ho = (H + 2 * p - d * (kh - 1) - 1) // s + 1
    Wo = (W + 2 * p - d * (kw - 1) - 1) // s + 1

    xp = jnp.pad(x_nhwc, ((0, 0), (p, p), (p, p), (0, 0)))
    taps = []
    for ki in range(kh):
        for kj in range(kw):
            hs, ws = ki * d, kj * d
            sl = xp[:, hs:hs + (Ho - 1) * s + 1:s,
                    ws:ws + (Wo - 1) * s + 1:s, :]          # (N, Ho, Wo, C)
            taps.append(sl)
    pat = jnp.concatenate(taps, axis=-1)                     # (N, Ho, Wo, kh*kw*C)
    return pat.reshape(N * Ho * Wo, kh * kw * C), (N, Ho, Wo)


# ------------------------------ jitted forward ------------------------------

@functools.partial(jax.jit, static_argnames=(
    "kh", "kw", "stride", "padding", "dilation", "apply_relu", "cout"))
def _basic_conv_forward(x, w_pad, scale, shift, *, kh, kw, stride, padding,
                        dilation, apply_relu, cout):
    # Early bf16 cast: every downstream HBM pass over the inflated patch
    # matrix (transpose / concat / pads) moves half the bytes.
    x_nhwc = jnp.transpose(x.astype(jnp.bfloat16), (0, 2, 3, 1))
    patches, (N, Ho, Wo) = _im2col_nhwc(x_nhwc, kh, kw, stride, padding,
                                        dilation)
    # Match the (possibly tk-padded) weight K dimension (large-K path only).
    K_w = w_pad.shape[0]
    K = patches.shape[1]
    if K_w != K:
        patches = jnp.pad(patches, ((0, 0), (0, K_w - K)))

    out = _conv_matmul(patches, w_pad, scale, shift,
                       apply_relu=apply_relu, cout=cout)     # (N*Ho*Wo, Cout)
    out = out.reshape(N, Ho, Wo, cout).astype(jnp.float32)
    return jnp.transpose(out, (0, 3, 1, 2))                  # back to NCHW


# ------------------------------ BasicConv -----------------------------------

class BasicConv:
    """JAX/Pallas port of the PyTorch BasicConv module (NCHW in/out)."""

    def __init__(self, in_planes, out_planes, kernel_size, stride=1,
                 padding=0, dilation=1, groups=1, relu=False, bn=False,
                 bias=True, *, key=None):
        if groups != 1:
            # TODO(synk): grouped convolution not implemented (default groups=1).
            raise NotImplementedError("groups != 1 not supported")
        self.in_planes = in_planes
        self.out_channels = out_planes
        self.kernel_size = (kernel_size, kernel_size) if isinstance(
            kernel_size, int) else tuple(kernel_size)
        self.stride = stride
        self.padding = padding
        self.dilation = dilation
        self.relu = relu
        self.bn = bn
        self.use_bias = bias

        if key is None:
            key = jax.random.PRNGKey(0)
        kh, kw = self.kernel_size
        fan_in = in_planes * kh * kw
        bound = 1.0 / jnp.sqrt(fan_in)
        kw_, kb_, kg_, kbeta_ = jax.random.split(key, 4)

        # Conv parameters (same shapes as nn.Conv2d: (Cout, Cin, kh, kw)).
        self.weight = jax.random.uniform(
            kw_, (out_planes, in_planes, kh, kw), jnp.float32, -bound, bound)
        self.bias = (jax.random.uniform(kb_, (out_planes,), jnp.float32,
                                        -bound, bound)
                     if bias else jnp.zeros((out_planes,), jnp.float32))

        # BatchNorm parameters (inference-mode semantics: running stats).
        # TODO(synk): training-mode BN (batch statistics / momentum update)
        # not implemented.
        if bn:
            self.bn_gamma = 1.0 + 0.1 * jax.random.normal(
                kg_, (out_planes,), jnp.float32)
            self.bn_beta = 0.1 * jax.random.normal(
                kbeta_, (out_planes,), jnp.float32)
            self.bn_mean = jnp.zeros((out_planes,), jnp.float32)
            self.bn_var = jnp.ones((out_planes,), jnp.float32)
            self.bn_eps = 1e-5

        # ---- Precompute the kernel-side constants once (not per call). ----
        K = in_planes * kh * kw
        Cp = _round_up(out_planes, 128)          # lane-dense output columns
        resident = K * Cp * 2 <= _RESIDENT_WEIGHT_BYTES
        K_pad = K if resident else _round_up(K, 512)

        # (Cout, Cin, kh, kw) -> (kh, kw, Cin, Cout) -> (K, Cout); row order
        # (ki, kj, c) matches the NHWC im2col feature order.
        w_t = jnp.transpose(self.weight, (2, 3, 1, 0)).reshape(K, out_planes)
        self._w_pad = jnp.pad(
            w_t, ((0, K_pad - K), (0, Cp - out_planes))).astype(jnp.bfloat16)

        # Fold conv bias and inference BN into one scale/shift pair:
        #   (conv + b) * s + t  with  s = gamma/sqrt(var+eps),
        #   t = (b - mean)*s + beta;  identity (s=1, t=b) without BN.
        if bn:
            scale = self.bn_gamma / jnp.sqrt(self.bn_var + self.bn_eps)
            shift = (self.bias - self.bn_mean) * scale + self.bn_beta
        else:
            scale = jnp.ones((out_planes,), jnp.float32)
            shift = self.bias
        self._scale = jnp.pad(scale, (0, Cp - out_planes),
                              constant_values=1.0).reshape(1, Cp)
        self._shift = jnp.pad(shift, (0, Cp - out_planes)).reshape(1, Cp)

    def __call__(self, x):
        kh, kw = self.kernel_size
        return _basic_conv_forward(
            x, self._w_pad, self._scale, self._shift,
            kh=kh, kw=kw, stride=self.stride, padding=self.padding,
            dilation=self.dilation, apply_relu=self.relu,
            cout=self.out_channels)


# ------------------------------- reference ----------------------------------

def _reference(module, x):
    y = jax.lax.conv_general_dilated(
        x.astype(jnp.float32), module.weight,
        window_strides=(module.stride, module.stride),
        padding=[(module.padding, module.padding)] * 2,
        rhs_dilation=(module.dilation, module.dilation),
        dimension_numbers=("NCHW", "OIHW", "NCHW"))
    if module.use_bias:
        y = y + module.bias[None, :, None, None]
    if module.bn:
        scale = module.bn_gamma / jnp.sqrt(module.bn_var + module.bn_eps)
        shift = module.bn_beta - module.bn_mean * scale
        y = y * scale[None, :, None, None] + shift[None, :, None, None]
    if module.relu:
        y = jnp.maximum(y, 0.0)
    return y


# --------------------------------- main --------------------------------------

if __name__ == "__main__":
    key = jax.random.PRNGKey(0)
    kx, kp1, kp2 = jax.random.split(key, 3)

    # Input: (N=2, Cin=4, H=16, W=16), NCHW like PyTorch.
    x = jax.random.normal(kx, (2, 4, 16, 16), jnp.float32)

    # Default BasicConv config: conv 3x3 pad=1, bias=True, bn=False, relu=False.
    m1 = BasicConv(4, 8, kernel_size=3, stride=1, padding=1, key=kp1)
    y1 = jax.block_until_ready(m1(x))
    r1 = _reference(m1, x)
    assert y1.shape == (2, 8, 16, 16)
    # bf16 operands (f32 accumulation) -> looser tolerance vs. the f32 reference.
    assert jnp.allclose(y1, r1, atol=5e-2, rtol=5e-2)

    # Full-featured config: bn=True, relu=True, bias=False, stride=2.
    m2 = BasicConv(4, 8, kernel_size=3, stride=2, padding=1,
                   relu=True, bn=True, bias=False, key=kp2)
    y2 = jax.block_until_ready(m2(x))
    r2 = _reference(m2, x)
    assert y2.shape == (2, 8, 8, 8)
    assert jnp.allclose(y2, r2, atol=5e-2, rtol=5e-2)

    print("KERNEL_OK")
</pallas_src>

<mosaic_0001>
module attributes {stable_mosaic.version = 11 : i64} {
  func.func @_conv_mm_resident_kernel(%arg0: i32, %arg1: memref<256x36xbf16, #tpu.memory_space<vmem>>, %arg2: memref<36x128xbf16, #tpu.memory_space<vmem>>, %arg3: memref<1x128xf32, #tpu.memory_space<vmem>>, %arg4: memref<1x128xf32, #tpu.memory_space<vmem>>, %arg5: memref<256x128xbf16, #tpu.memory_space<vmem>>) attributes {dimension_semantics = [#tpu.dimension_semantics<parallel>], iteration_bounds = array<i64: 2>, scalar_prefetch = 0 : i64, scratch_operands = 0 : i64, tpu.core_type = #tpu.core_type<tc>, window_params = [{transform_indices = @transform_0, window_bounds = array<i64: 256, 36>}, {pipeline_mode = #tpu.pipeline_mode<synchronous>, transform_indices = @transform_1, window_bounds = array<i64: 36, 128>}, {pipeline_mode = #tpu.pipeline_mode<synchronous>, transform_indices = @transform_2, window_bounds = array<i64: 1, 128>}, {pipeline_mode = #tpu.pipeline_mode<synchronous>, transform_indices = @transform_3, window_bounds = array<i64: 1, 128>}, {transform_indices = @transform_4, window_bounds = array<i64: 256, 128>}]} {
    %c0 = arith.constant 0 : index
    %c0_0 = arith.constant 0 : index
    %0 = vector.load %arg1[%c0, %c0_0] : memref<256x36xbf16, #tpu.memory_space<vmem>>, vector<256x36xbf16>
    %c0_1 = arith.constant 0 : index
    %c0_2 = arith.constant 0 : index
    %1 = vector.load %arg2[%c0_1, %c0_2] : memref<36x128xbf16, #tpu.memory_space<vmem>>, vector<36x128xbf16>
    %cst = arith.constant dense<0.000000e+00> : vector<256x128xf32>
    %2 = tpu.matmul %0, %1, %cst {dimension_numbers = #tpu.dot_dimension_numbers<[1], [0], [0], [1], [0, 0, 1, 1], [], []>} : vector<256x36xbf16>, vector<36x128xbf16>, vector<256x128xf32> -> vector<256x128xf32>
    %c0_3 = arith.constant 0 : index
    %c0_4 = arith.constant 0 : index
    %3 = vector.load %arg3[%c0_3, %c0_4] : memref<1x128xf32, #tpu.memory_space<vmem>>, vector<1x128xf32>
    %4 = vector.broadcast %3 : vector<1x128xf32> to vector<256x128xf32>
    %5 = arith.mulf %2, %4 : vector<256x128xf32>
    %c0_5 = arith.constant 0 : index
    %c0_6 = arith.constant 0 : index
    %6 = vector.load %arg4[%c0_5, %c0_6] : memref<1x128xf32, #tpu.memory_space<vmem>>, vector<1x128xf32>
    %7 = vector.broadcast %6 : vector<1x128xf32> to vector<256x128xf32>
    %8 = arith.addf %5, %7 : vector<256x128xf32>
    %9 = arith.truncf %8 : vector<256x128xf32> to vector<256x128xbf16>
    %c0_7 = arith.constant 0 : index
    %c0_8 = arith.constant 0 : index
    %10 = vector.load %arg5[%c0_7, %c0_8] : memref<256x128xbf16, #tpu.memory_space<vmem>>, vector<256x128xbf16>
    tpu.vector_store %arg5[%c0_7, %c0_8], %9 {strides = array<i32>} : memref<256x128xbf16, #tpu.memory_space<vmem>>, vector<256x128xbf16>,
    return
  }
  func.func @transform_0(%arg0: i32) -> (i32, i32) {
    %c0_i32 = arith.constant 0 : i32
    %c0_i32_0 = arith.constant 0 : i32
    return %arg0, %c0_i32 : i32, i32
  }
  func.func @transform_1(%arg0: i32) -> (i32, i32) {
    %c0_i32 = arith.constant 0 : i32
    %c0_i32_0 = arith.constant 0 : i32
    %c0_i32_1 = arith.constant 0 : i32
    return %c0_i32, %c0_i32_0 : i32, i32
  }
  func.func @transform_2(%arg0: i32) -> (i32, i32) {
    %c0_i32 = arith.constant 0 : i32
    %c0_i32_0 = arith.constant 0 : i32
    %c0_i32_1 = arith.constant 0 : i32
    return %c0_i32, %c0_i32_0 : i32, i32
  }
  func.func @transform_3(%arg0: i32) -> (i32, i32) {
    %c0_i32 = arith.constant 0 : i32
    %c0_i32_0 = arith.constant 0 : i32
    %c0_i32_1 = arith.constant 0 : i32
    return %c0_i32, %c0_i32_0 : i32, i32
  }
  func.func @transform_4(%arg0: i32) -> (i32, i32) {
    %c0_i32 = arith.constant 0 : i32
    %c0_i32_0 = arith.constant 0 : i32
    return %arg0, %c0_i32 : i32, i32
  }
}

</mosaic_0001>

<llo_original>
// kernel: _basic_conv_forward.1
$region0: #{_basic_conv_forward.1}
  #allocation0 [shape = 'u32[]', space=smem, size = 0x4, offset = 0x4, fixed_abs, tag = 'smem constant byte address 0x4 - core index']
  #allocation1 [shape = 'u32[72,128]{1,0:T(1,128)}', space=vmem, size = 0x9000, scoped, tag = 'internal scratch']
  %s0 = inlined_call_operand.vmem [shape: bf16[512,36], index: 0, kind: input, shape index: {}]
  %s1 = inlined_call_operand.vmem [shape: bf16[36,128], index: 1, kind: input, shape index: {}]
  %s2 = inlined_call_operand.vmem [shape: f32[1,128], index: 2, kind: input, shape index: {}]
  %s3 = inlined_call_operand.vmem [shape: f32[1,128], index: 3, kind: input, shape index: {}]
  %s4 = inlined_call_operand.vmem [shape: bf16[512,128], index: 4, kind: output, shape index: {}]
  %s5 = sld [smem:[#allocation0]]
  $region49: #{_basic_conv_forward.1} parent=0
    _
  %s7 = ssub.s32 1, %s5
  %s8 = scalar_select 0, %s7, %s5
  loop: start=0, step=1, limit=4
  $region2: #{_basic_conv_forward.1} parent=0 // loop_pre_header
    _
  $region3: #{_basic_conv_forward.1} parent=0 // loop_header
    %s10 = sphi 0, %s14
    %p11 = scmp.ge.s32.totalorder %s10, 4
    %s20 = sphi 0, %s22
    %s23 = sphi 0, %s20
    %s24 = sphi 0, %s23
    %s40 = sphi 0, %s24
    %s44 = sphi 0, %s44
    %s46 = sphi 0, %s44
    %s47 = sphi 0, %s46
    %s61 = sphi 0, %s47
    %s65 = sphi 0, %s65
    %s67 = sphi 0, %s65
    %s68 = sphi 0, %s67
    %s82 = sphi 0, %s68
    %s86 = sphi 0, %s86
    %s88 = sphi 0, %s86
    %s89 = sphi 0, %s88
    %s103 = sphi 0, %s89
    %s109 = sphi 0, %s111
    %s112 = sphi 0, %s109
    %s113 = sphi 0, %s112
    %s129 = sphi 0, %s113
  $region4: #{_basic_conv_forward.1} parent=0 // loop_header_branch
    %13 = sbr.rel (%p11) target = $region8
  $region5: #{_basic_conv_forward.1} parent=0 // loop_body
    %s15 = ssub.s32 %s10, 1
    %s16 = ssub.s32 %s10, 2
    %s17 = sadd.s32 %s10, 1
    %s18 = ssub.s32 %s10, %s17
    %p19 = scmp.eq.s32.totalorder %s18, 0
    %s21 = sadd.s32 %s20, 1
    %s22 = scalar_select %p19, %s20, %s21
    %p25 = pneg %p19
    %p26 = scmp.eq.s32.totalorder %s10, 1
    %p27 = por %p25, %p26
    %p28 = scmp.ne.s32.totalorder %s20, %s23
    %p29 = scmp.eq.s32.totalorder %s10, 0
    %p30 = por %p28, %p29
    %p31 = scmp.ne.s32.totalorder %s20, %s23
    %p32 = scmp.eq.s32.totalorder %s15, 1
    %p33 = por %p31, %p32
    %p34 = scmp.ne.s32.totalorder %s23, %s24
    %p35 = scmp.eq.s32.totalorder %s15, 0
    %p36 = por %p34, %p35
    %p37 = scmp.ne.s32.totalorder %s23, %s24
    %p38 = scmp.eq.s32.totalorder %s16, 1
    %p39 = por %p37, %p38
    %p41 = scmp.ne.s32.totalorder %s24, %s40
    %p42 = scmp.eq.s32.totalorder %s16, 0
    %p43 = por %p41, %p42
    %s45 = sadd.s32 %s44, 1
    %p48 = scmp.eq.s32.totalorder %s10, 1
    %p49 = scmp.ne.s32.totalorder %s44, %s46
    %p50 = scmp.eq.s32.totalorder %s10, 0
    %p51 = por %p49, %p50
    %p52 = scmp.ne.s32.totalorder %s44, %s46
    %p53 = scmp.eq.s32.totalorder %s15, 1
    %p54 = por %p52, %p53
    %p55 = scmp.ne.s32.totalorder %s46, %s47
    %p56 = scmp.eq.s32.totalorder %s15, 0
    %p57 = por %p55, %p56
    %p58 = scmp.ne.s32.totalorder %s46, %s47
    %p59 = scmp.eq.s32.totalorder %s16, 1
    %p60 = por %p58, %p59
    %p62 = scmp.ne.s32.totalorder %s47, %s61
    %p63 = scmp.eq.s32.totalorder %s16, 0
    %p64 = por %p62, %p63
    %s66 = sadd.s32 %s65, 1
    %p69 = scmp.eq.s32.totalorder %s10, 1
    %p70 = scmp.ne.s32.totalorder %s65, %s67
    %p71 = scmp.eq.s32.totalorder %s10, 0
    %p72 = por %p70, %p71
    %p73 = scmp.ne.s32.totalorder %s65, %s67
    %p74 = scmp.eq.s32.totalorder %s15, 1
    %p75 = por %p73, %p74
    %p76 = scmp.ne.s32.totalorder %s67, %s68
    %p77 = scmp.eq.s32.totalorder %s15, 0
    %p78 = por %p76, %p77
    %p79 = scmp.ne.s32.totalorder %s67, %s68
    %p80 = scmp.eq.s32.totalorder %s16, 1
    %p81 = por %p79, %p80
    %p83 = scmp.ne.s32.totalorder %s68, %s82
    %p84 = scmp.eq.s32.totalorder %s16, 0
    %p85 = por %p83, %p84
    %s87 = sadd.s32 %s86, 1
    %p90 = scmp.eq.s32.totalorder %s10, 1
    %p91 = scmp.ne.s32.totalorder %s86, %s88
    %p92 = scmp.eq.s32.totalorder %s10, 0
    %p93 = por %p91, %p92
    %p94 = scmp.ne.s32.totalorder %s86, %s88
    %p95 = scmp.eq.s32.totalorder %s15, 1
    %p96 = por %p94, %p95
    %p97 = scmp.ne.s32.totalorder %s88, %s89
    %p98 = scmp.eq.s32.totalorder %s15, 0
    %p99 = por %p97, %p98
    %p100 = scmp.ne.s32.totalorder %s88, %s89
    %p101 = scmp.eq.s32.totalorder %s16, 1
    %p102 = por %p100, %p101
    %p104 = scmp.ne.s32.totalorder %s89, %s103
    %p105 = scmp.eq.s32.totalorder %s16, 0
    %p106 = por %p104, %p105
    %s107 = ssub.s32 %s10, %s17
    %p108 = scmp.eq.s32.totalorder %s107, 0
    %s110 = sadd.s32 %s109, 1
    %s111 = scalar_select %p108, %s109, %s110
    %p114 = pneg %p108
    %p115 = scmp.eq.s32.totalorder %s10, 1
    %p116 = por %p114, %p115
    %p117 = scmp.ne.s32.totalorder %s109, %s112
    %p118 = scmp.eq.s32.totalorder %s10, 0
    %p119 = por %p117, %p118
    %p120 = scmp.ne.s32.totalorder %s109, %s112
    %p121 = scmp.eq.s32.totalorder %s15, 1
    %p122 = por %p120, %p121
    %p123 = scmp.ne.s32.totalorder %s112, %s113
    %p124 = scmp.eq.s32.totalorder %s15, 0
    %p125 = por %p123, %p124
    %p126 = scmp.ne.s32.totalorder %s112, %s113
    %p127 = scmp.eq.s32.totalorder %s16, 1
    %p128 = por %p126, %p127
    %p130 = scmp.ne.s32.totalorder %s113, %s129
    %p131 = scmp.eq.s32.totalorder %s16, 0
    %p132 = por %p130, %p131
    %p133 = scmp.le.s32.totalorder 1, %s10
    %p134 = scmp.lt.s32.totalorder %s10, 3
    %p135 = pnand %p133, %p134
    %p136 = pneg %p135
    // Predicated region
    $region9: #{_basic_conv_forward.1} parent=5 // pred_check
      _
    $region10: #{_basic_conv_forward.1} parent=5 // pred_check_branch
      %138 = sbr.rel (%p135) target = $region12
    $region11: #{_basic_conv_forward.1} parent=5 // pred_region
      %s139 = ssub.s32 %s10, 1
      // Predicated region
      $region13: #{_basic_conv_forward.1} parent=11 // pred_check
        %p140 = pneg %p57
      $region14: #{_basic_conv_forward.1} parent=11 // pred_check_branch
        %142 = sbr.rel (%p140) target = $region16
      $region15: #{_basic_conv_forward.1} parent=11 // pred_region
        _
      $region16: #{_basic_conv_forward.1} parent=11 // pred_fallthru
        _
      // Predicated region
      $region17: #{_basic_conv_forward.1} parent=11 // pred_check
        %p143 = pneg %p78
      $region18: #{_basic_conv_forward.1} parent=11 // pred_check_branch
        %145 = sbr.rel (%p143) target = $region20
      $region19: #{_basic_conv_forward.1} parent=11 // pred_region
        _
      $region20: #{_basic_conv_forward.1} parent=11 // pred_fallthru
        _
      // Predicated region
      $region21: #{_basic_conv_forward.1} parent=11 // pred_check
        %p146 = pneg %p99
      $region22: #{_basic_conv_forward.1} parent=11 // pred_check_branch
        %148 = sbr.rel (%p146) target = $region24
      $region23: #{_basic_conv_forward.1} parent=11 // pred_region
        _
      $region24: #{_basic_conv_forward.1} parent=11 // pred_fallthru
        _
    $region12: #{_basic_conv_forward.1} parent=5 // pred_fallthru
      _
    %p149 = scmp.lt.s32.totalorder %s10, 2
    // Predicated region
    $region25: #{_basic_conv_forward.1} parent=5 // pred_check
      %p150 = pneg %p149
    $region26: #{_basic_conv_forward.1} parent=5 // pred_check_branch
      %152 = sbr.rel (%p150) target = $region28
    $region27: #{_basic_conv_forward.1} parent=5 // pred_region
      // Predicated region
      $region29: #{_basic_conv_forward.1} parent=27 // pred_check
        %p153 = pneg %p30
      $region30: #{_basic_conv_forward.1} parent=27 // pred_check_branch
        %155 = sbr.rel (%p153) target = $region32
      $region31: #{_basic_conv_forward.1} parent=27 // pred_region
        %s156 = smul.u32 32, %s10
        %p157 = scmp.lt.s32.totalorder %s156, 63
        %s158 = scalar_select %p157, %s156, 63
        %s159 = smul.addr %s158, 4
        %s160 = scalar_lea.vmem %s0, %s159
        %s161 = smul.u32 32, %s10
      $region32: #{_basic_conv_forward.1} parent=27 // pred_fallthru
        _
    $region28: #{_basic_conv_forward.1} parent=5 // pred_fallthru
      _
    %p162 = scmp.le.s32.totalorder 1, %s10
    %p163 = scmp.lt.s32.totalorder %s10, 3
    %p164 = pnand %p162, %p163
    %p165 = pneg %p164
    // Predicated region
    $region33: #{_basic_conv_forward.1} parent=5 // pred_check
      _
    $region34: #{_basic_conv_forward.1} parent=5 // pred_check_branch
      %167 = sbr.rel (%p164) target = $region36
    $region35: #{_basic_conv_forward.1} parent=5 // pred_region
      %s168 = ssub.s32 %s10, 1
      %s169 = smul.u32 32, %s15
      %p170 = scmp.lt.s32.totalorder %s169, 63
      %s171 = scalar_select %p170, %s169, 63
      %s172 = smul.addr %s171, 4
      %s173 = scalar_lea.vmem %s0, %s172
      %p174 = pneg %p36
      %p175 = pneg %p33
      %p176 = pneg %p57
      %p177 = pneg %p54
      %p178 = pneg %p78
      %p179 = pneg %p75
      %p180 = pneg %p99
      %p181 = pneg %p96
      %p182 = pneg %p125
      %p183 = pneg %p122
      %s184 = smul.u32 32, %s15
      %p185 = scmp.lt.s32.totalorder %s184, 63
      %s186 = scalar_select %p185, %s184, 63
      %s187 = smul.addr %s186, 4
      %s188 = scalar_lea.vmem %s4, %s187
      %s189 = smul.u32 32, %s15
      %p190 = scmp.lt.s32.totalorder %s189, 63
      %s191 = scalar_select %p190, %s189, 63
      %s192 = smul.addr %s191, 4
      %s193 = scalar_lea.vmem %s0, %s192
      %s194 = smul.u32 32, %s15
      %s195 = smul.u32 32, %s15
      %p196 = scmp.lt.s32.totalorder %s195, 63
      %s197 = scalar_select %p196, %s195, 63
      %s198 = smul.addr %s197, 4
      %s199 = scalar_lea.vmem %s4, %s198
      %s200 = smul.u32 32, %s15
      %v202 = vld [vmem:[%s193] sm:$0xf]
      %v203 = vld [vmem:[%s193 + $0x4] sm:$0xf]
      %v204 = vld [vmem:[%s193 + $0x8] sm:$0xf]
      %v205 = vld [vmem:[%s193 + $0xc] sm:$0xf]
      %v206 = vld [vmem:[%s193 + $0x10] sm:$0xf]
      %v207 = vld [vmem:[%s193 + $0x14] sm:$0xf]
      %v208 = vld [vmem:[%s193 + $0x18] sm:$0xf]
      %v209 = vld [vmem:[%s193 + $0x1c] sm:$0xf]
      %v210 = vld [vmem:[%s193 + $0x20] sm:$0xf]
      %v211 = vld [vmem:[%s193 + $0x24] sm:$0xf]
      %v212 = vld [vmem:[%s193 + $0x28] sm:$0xf]
      %v213 = vld [vmem:[%s193 + $0x2c] sm:$0xf]
      %v214 = vld [vmem:[%s193 + $0x30] sm:$0xf]
      %v215 = vld [vmem:[%s193 + $0x34] sm:$0xf]
      %v216 = vld [vmem:[%s193 + $0x38] sm:$0xf]
      %v217 = vld [vmem:[%s193 + $0x3c] sm:$0xf]
      %v218 = vld [vmem:[%s193 + $0x40] sm:$0xf]
      %v219 = vld [vmem:[%s193 + $0x44] sm:$0xf]
      %v220 = vld [vmem:[%s193 + $0x48] sm:$0xf]
      %v221 = vld [vmem:[%s193 + $0x4c] sm:$0xf]
      %v222 = vld [vmem:[%s193 + $0x50] sm:$0xf]
      %v223 = vld [vmem:[%s193 + $0x54] sm:$0xf]
      %v224 = vld [vmem:[%s193 + $0x58] sm:$0xf]
      %v225 = vld [vmem:[%s193 + $0x5c] sm:$0xf]
      %v226 = vld [vmem:[%s193 + $0x60] sm:$0xf]
      %v227 = vld [vmem:[%s193 + $0x64] sm:$0xf]
      %v228 = vld [vmem:[%s193 + $0x68] sm:$0xf]
      %v229 = vld [vmem:[%s193 + $0x6c] sm:$0xf]
      %v230 = vld [vmem:[%s193 + $0x70] sm:$0xf]
      %v231 = vld [vmem:[%s193 + $0x74] sm:$0xf]
      %v232 = vld [vmem:[%s193 + $0x78] sm:$0xf]
      %v233 = vld [vmem:[%s193 + $0x7c] sm:$0xf]
      %v234 = vld [vmem:[%s1] sm:$0xf]
      %v235 = vld [vmem:[%s1 + $0x4] sm:$0xf]
      %v236 = vld [vmem:[%s1 + $0x8] sm:$0xf]
      %v237 = vld [vmem:[%s1 + $0xc] sm:$0xf]
      %v238 = vld [vmem:[%s1 + $0x10] sm:$0x3]
      %v271 = vunpack.c.l.b16 %v202
      %v272 = vunpack.c.l.b16 %v203
      %v273 = vunpack.c.l.b16 %v204
      %v274 = vunpack.c.l.b16 %v205
      %v275 = vunpack.c.l.b16 %v206
      %v276 = vunpack.c.l.b16 %v207
      %v277 = vunpack.c.l.b16 %v208
      %v278 = vunpack.c.l.b16 %v209
      %v279 = vunpack.c.l.b16 %v210
      %v280 = vunpack.c.l.b16 %v211
      %v281 = vunpack.c.l.b16 %v212
      %v282 = vunpack.c.l.b16 %v213
      %v283 = vunpack.c.l.b16 %v214
      %v284 = vunpack.c.l.b16 %v215
      %v285 = vunpack.c.l.b16 %v216
      %v286 = vunpack.c.l.b16 %v217
      %v287 = vunpack.c.l.b16 %v218
      %v288 = vunpack.c.l.b16 %v219
      %v289 = vunpack.c.l.b16 %v220
      %v290 = vunpack.c.l.b16 %v221
      %v291 = vunpack.c.l.b16 %v222
      %v292 = vunpack.c.l.b16 %v223
      %v293 = vunpack.c.l.b16 %v224
      %v294 = vunpack.c.l.b16 %v225
      %v295 = vunpack.c.l.b16 %v226
      %v296 = vunpack.c.l.b16 %v227
      %v297 = vunpack.c.l.b16 %v228
      %v298 = vunpack.c.l.b16 %v229
      %v299 = vunpack.c.l.b16 %v230
      %v300 = vunpack.c.l.b16 %v231
      %v301 = vunpack.c.l.b16 %v232
      %v302 = vunpack.c.l.b16 %v233
      %v303 = vpack.c.b16 %v272, %v271
      %v304 = vpack.c.b16 %v274, %v273
      %v305 = vpack.c.b16 %v276, %v275
      %v306 = vpack.c.b16 %v278, %v277
      %v307 = vpack.c.b16 %v280, %v279
      %v308 = vpack.c.b16 %v282, %v281
      %v309 = vpack.c.b16 %v284, %v283
      %v310 = vpack.c.b16 %v286, %v285
      %v311 = vpack.c.b16 %v288, %v287
      %v312 = vpack.c.b16 %v290, %v289
      %v313 = vpack.c.b16 %v292, %v291
      %v314 = vpack.c.b16 %v294, %v293
      %v315 = vpack.c.b16 %v296, %v295
      %v316 = vpack.c.b16 %v298, %v297
      %v317 = vpack.c.b16 %v300, %v299
      %v318 = vpack.c.b16 %v302, %v301
      %v324 = vunpack.c.l.b16 %v234
      %v325 = vunpack.c.l.b16 %v235
      %v326 = vunpack.c.l.b16 %v236
      %v327 = vunpack.c.l.b16 %v237
      %v328 = vunpack.c.l.b16 %v238
      %v329 = vpack.c.b16 %v325, %v324
      %v330 = vpack.c.b16 %v327, %v326
      %v331 = vpack.c.b16 %v328, %v328
      %vm334 = vcmask 293888
      %v336 = vsel %vm334, %v303, 0
      %v339 = vsel %vm334, %v304, 0
      %v342 = vsel %vm334, %v305, 0
      %v345 = vsel %vm334, %v306, 0
      %v348 = vsel %vm334, %v307, 0
      %v351 = vsel %vm334, %v308, 0
      %v354 = vsel %vm334, %v309, 0
      %v357 = vsel %vm334, %v310, 0
      %v360 = vsel %vm334, %v311, 0
      %v363 = vsel %vm334, %v312, 0
      %v366 = vsel %vm334, %v313, 0
      %v369 = vsel %vm334, %v314, 0
      %v372 = vsel %vm334, %v315, 0
      %v375 = vsel %vm334, %v316, 0
      %v378 = vsel %vm334, %v317, 0
      %v381 = vsel %vm334, %v318, 0
      %vm383 = vcmask 1041408
      %v385 = vsel %vm383, %v331, 0
      %387 = vmatpush.bf16.msra.mxu0 0
      %388 = vmatpush.bf16.msra.mxu0 0
      %389 = vmatpush.bf16.msra.mxu0 0
      %390 = vmatpush.bf16.msra.mxu0 0
      %391 = vmatpush.bf16.msra.mxu0 0
      %392 = vmatpush.bf16.msra.mxu0 %v385
      %393 = vmatpush.bf16.msra.mxu0 %v330
      %394 = vmatpush.bf16.msra.mxu0 %v329
      %395 = vmatmul.bf16.gmra.mxu0 %v336
      %v396 = vpop.f32.mrf.mxu0
      %v397 = vadd.f32 0.0, %v396
      %v398 = vpop.f32.mrf.mxu0
      %v399 = vadd.f32 0.0, %v398
      %400 = vmatmul.bf16.gmra.mxu0 %v339
      %v401 = vpop.f32.mrf.mxu0
      %v402 = vadd.f32 0.0, %v401
      %v403 = vpop.f32.mrf.mxu0
      %v404 = vadd.f32 0.0, %v403
      %405 = vmatmul.bf16.gmra.mxu0 %v342
      %v406 = vpop.f32.mrf.mxu0
      %v407 = vadd.f32 0.0, %v406
      %v408 = vpop.f32.mrf.mxu0
      %v409 = vadd.f32 0.0, %v408
      %410 = vmatmul.bf16.gmra.mxu0 %v345
      %v411 = vpop.f32.mrf.mxu0
      %v412 = vadd.f32 0.0, %v411
      %v413 = vpop.f32.mrf.mxu0
      %v414 = vadd.f32 0.0, %v413
      %415 = vmatmul.bf16.gmra.mxu0 %v348
      %v416 = vpop.f32.mrf.mxu0
      %v417 = vadd.f32 0.0, %v416
      %v418 = vpop.f32.mrf.mxu0
      %v419 = vadd.f32 0.0, %v418
      %420 = vmatmul.bf16.gmra.mxu0 %v351
      %v421 = vpop.f32.mrf.mxu0
      %v422 = vadd.f32 0.0, %v421
      %v423 = vpop.f32.mrf.mxu0
      %v424 = vadd.f32 0.0, %v423
      %425 = vmatmul.bf16.gmra.mxu0 %v354
      %v426 = vpop.f32.mrf.mxu0
      %v427 = vadd.f32 0.0, %v426
      %v428 = vpop.f32.mrf.mxu0
      %v429 = vadd.f32 0.0, %v428
      %430 = vmatmul.bf16.gmra.mxu0 %v357
      %v431 = vpop.f32.mrf.mxu0
      %v432 = vadd.f32 0.0, %v431
      %v433 = vpop.f32.mrf.mxu0
      %v434 = vadd.f32 0.0, %v433
      %435 = vmatmul.bf16.gmra.mxu0 %v360
      %v436 = vpop.f32.mrf.mxu0
      %v437 = vadd.f32 0.0, %v436
      %v438 = vpop.f32.mrf.mxu0
      %v439 = vadd.f32 0.0, %v438
      %440 = vmatmul.bf16.gmra.mxu0 %v363
      %v441 = vpop.f32.mrf.mxu0
      %v442 = vadd.f32 0.0, %v441
      %v443 = vpop.f32.mrf.mxu0
      %v444 = vadd.f32 0.0, %v443
      %445 = vmatmul.bf16.gmra.mxu0 %v366
      %v446 = vpop.f32.mrf.mxu0
      %v447 = vadd.f32 0.0, %v446
      %v448 = vpop.f32.mrf.mxu0
      %v449 = vadd.f32 0.0, %v448
      %450 = vmatmul.bf16.gmra.mxu0 %v369
      %v451 = vpop.f32.mrf.mxu0
      %v452 = vadd.f32 0.0, %v451
      %v453 = vpop.f32.mrf.mxu0
      %v454 = vadd.f32 0.0, %v453
      %455 = vmatmul.bf16.gmra.mxu0 %v372
      %v456 = vpop.f32.mrf.mxu0
      %v457 = vadd.f32 0.0, %v456
      %v458 = vpop.f32.mrf.mxu0
      %v459 = vadd.f32 0.0, %v458
      %460 = vmatmul.bf16.gmra.mxu0 %v375
      %v461 = vpop.f32.mrf.mxu0
      %v462 = vadd.f32 0.0, %v461
      %v463 = vpop.f32.mrf.mxu0
      %v464 = vadd.f32 0.0, %v463
      %465 = vmatmul.bf16.gmra.mxu0 %v378
      %v466 = vpop.f32.mrf.mxu0
      %v467 = vadd.f32 0.0, %v466
      %v468 = vpop.f32.mrf.mxu0
      %v469 = vadd.f32 0.0, %v468
      %470 = vmatmul.bf16.gmra.mxu0 %v381
      %v471 = vpop.f32.mrf.mxu0
      %v472 = vadd.f32 0.0, %v471
      %v473 = vpop.f32.mrf.mxu0
      %v474 = vadd.f32 0.0, %v473
      %475 = vdwg.mxu0
      %v476 = vld [vmem:[%s2] sm:$0x1]
      %v478 = vperm.slane %v476, 0
      %v480 = vmul.f32 %v397, %v478
      %v481 = vmul.f32 %v399, %v478
      %v482 = vmul.f32 %v402, %v478
      %v483 = vmul.f32 %v404, %v478
      %v484 = vmul.f32 %v407, %v478
      %v485 = vmul.f32 %v409, %v478
      %v486 = vmul.f32 %v412, %v478
      %v487 = vmul.f32 %v414, %v478
      %v488 = vmul.f32 %v417, %v478
      %v489 = vmul.f32 %v419, %v478
      %v490 = vmul.f32 %v422, %v478
      %v491 = vmul.f32 %v424, %v478
      %v492 = vmul.f32 %v427, %v478
      %v493 = vmul.f32 %v429, %v478
      %v494 = vmul.f32 %v432, %v478
      %v495 = vmul.f32 %v434, %v478
      %v496 = vmul.f32 %v437, %v478
      %v497 = vmul.f32 %v439, %v478
      %v498 = vmul.f32 %v442, %v478
      %v499 = vmul.f32 %v444, %v478
      %v500 = vmul.f32 %v447, %v478
      %v501 = vmul.f32 %v449, %v478
      %v502 = vmul.f32 %v452, %v478
      %v503 = vmul.f32 %v454, %v478
      %v504 = vmul.f32 %v457, %v478
      %v505 = vmul.f32 %v459, %v478
      %v506 = vmul.f32 %v462, %v478
      %v507 = vmul.f32 %v464, %v478
      %v508 = vmul.f32 %v467, %v478
      %v509 = vmul.f32 %v469, %v478
      %v510 = vmul.f32 %v472, %v478
      %v511 = vmul.f32 %v474, %v478
      %v512 = vld [vmem:[%s3] sm:$0x1]
      %v514 = vperm.slane %v512, 0
      %v516 = vadd.f32 %v480, %v514
      %v517 = vadd.f32 %v481, %v514
      %v518 = vadd.f32 %v482, %v514
      %v519 = vadd.f32 %v483, %v514
      %v520 = vadd.f32 %v484, %v514
      %v521 = vadd.f32 %v485, %v514
      %v522 = vadd.f32 %v486, %v514
      %v523 = vadd.f32 %v487, %v514
      %v524 = vadd.f32 %v488, %v514
      %v525 = vadd.f32 %v489, %v514
      %v526 = vadd.f32 %v490, %v514
      %v527 = vadd.f32 %v491, %v514
      %v528 = vadd.f32 %v492, %v514
      %v529 = vadd.f32 %v493, %v514
      %v530 = vadd.f32 %v494, %v514
      %v531 = vadd.f32 %v495, %v514
      %v532 = vadd.f32 %v496, %v514
      %v533 = vadd.f32 %v497, %v514
      %v534 = vadd.f32 %v498, %v514
      %v535 = vadd.f32 %v499, %v514
      %v536 = vadd.f32 %v500, %v514
      %v537 = vadd.f32 %v501, %v514
      %v538 = vadd.f32 %v502, %v514
      %v539 = vadd.f32 %v503, %v514
      %v540 = vadd.f32 %v504, %v514
      %v541 = vadd.f32 %v505, %v514
      %v542 = vadd.f32 %v506, %v514
      %v543 = vadd.f32 %v507, %v514
      %v544 = vadd.f32 %v508, %v514
      %v545 = vadd.f32 %v509, %v514
      %v546 = vadd.f32 %v510, %v514
      %v547 = vadd.f32 %v511, %v514
      %v548 = vpack.c.bf16 %v516, %v516
      %v549 = vpack.c.bf16 %v517, %v517
      %v550 = vpack.c.bf16 %v518, %v518
      %v551 = vpack.c.bf16 %v519, %v519
      %v552 = vpack.c.bf16 %v520, %v520
      %v553 = vpack.c.bf16 %v521, %v521
      %v554 = vpack.c.bf16 %v522, %v522
      %v555 = vpack.c.bf16 %v523, %v523
      %v556 = vpack.c.bf16 %v524, %v524
      %v557 = vpack.c.bf16 %v525, %v525
      %v558 = vpack.c.bf16 %v526, %v526
      %v559 = vpack.c.bf16 %v527, %v527
      %v560 = vpack.c.bf16 %v528, %v528
      %v561 = vpack.c.bf16 %v529, %v529
      %v562 = vpack.c.bf16 %v530, %v530
      %v563 = vpack.c.bf16 %v531, %v531
      %v564 = vpack.c.bf16 %v532, %v532
      %v565 = vpack.c.bf16 %v533, %v533
      %v566 = vpack.c.bf16 %v534, %v534
      %v567 = vpack.c.bf16 %v535, %v535
      %v568 = vpack.c.bf16 %v536, %v536
      %v569 = vpack.c.bf16 %v537, %v537
      %v570 = vpack.c.bf16 %v538, %v538
      %v571 = vpack.c.bf16 %v539, %v539
      %v572 = vpack.c.bf16 %v540, %v540
      %v573 = vpack.c.bf16 %v541, %v541
      %v574 = vpack.c.bf16 %v542, %v542
      %v575 = vpack.c.bf16 %v543, %v543
      %v576 = vpack.c.bf16 %v544, %v544
      %v577 = vpack.c.bf16 %v545, %v545
      %v578 = vpack.c.bf16 %v546, %v546
      %v579 = vpack.c.bf16 %v547, %v547
      %580 = vst [vmem:[%s199] sm:$0xf] %v548
      %581 = vst [vmem:[%s199 + $0x4] sm:$0xf] %v549
      %582 = vst [vmem:[%s199 + $0x8] sm:$0xf] %v550
      %583 = vst [vmem:[%s199 + $0xc] sm:$0xf] %v551
      %584 = vst [vmem:[%s199 + $0x10] sm:$0xf] %v552
      %585 = vst [vmem:[%s199 + $0x14] sm:$0xf] %v553
      %586 = vst [vmem:[%s199 + $0x18] sm:$0xf] %v554
      %587 = vst [vmem:[%s199 + $0x1c] sm:$0xf] %v555
      %588 = vst [vmem:[%s199 + $0x20] sm:$0xf] %v556
      %589 = vst [vmem:[%s199 + $0x24] sm:$0xf] %v557
      %590 = vst [vmem:[%s199 + $0x28] sm:$0xf] %v558
      %591 = vst [vmem:[%s199 + $0x2c] sm:$0xf] %v559
      %592 = vst [vmem:[%s199 + $0x30] sm:$0xf] %v560
      %593 = vst [vmem:[%s199 + $0x34] sm:$0xf] %v561
      %594 = vst [vmem:[%s199 + $0x38] sm:$0xf] %v562
      %595 = vst [vmem:[%s199 + $0x3c] sm:$0xf] %v563
      %596 = vst [vmem:[%s199 + $0x40] sm:$0xf] %v564
      %597 = vst [vmem:[%s199 + $0x44] sm:$0xf] %v565
      %598 = vst [vmem:[%s199 + $0x48] sm:$0xf] %v566
      %599 = vst [vmem:[%s199 + $0x4c] sm:$0xf] %v567
      %600 = vst [vmem:[%s199 + $0x50] sm:$0xf] %v568
      %601 = vst [vmem:[%s199 + $0x54] sm:$0xf] %v569
      %602 = vst [vmem:[%s199 + $0x58] sm:$0xf] %v570
      %603 = vst [vmem:[%s199 + $0x5c] sm:$0xf] %v571
      %604 = vst [vmem:[%s199 + $0x60] sm:$0xf] %v572
      %605 = vst [vmem:[%s199 + $0x64] sm:$0xf] %v573
      %606 = vst [vmem:[%s199 + $0x68] sm:$0xf] %v574
      %607 = vst [vmem:[%s199 + $0x6c] sm:$0xf] %v575
      %608 = vst [vmem:[%s199 + $0x70] sm:$0xf] %v576
      %609 = vst [vmem:[%s199 + $0x74] sm:$0xf] %v577
      %610 = vst [vmem:[%s199 + $0x78] sm:$0xf] %v578
      %611 = vst [vmem:[%s199 + $0x7c] sm:$0xf] %v579
      %s612 = smul.u32 32, %s15
      %p613 = scmp.lt.s32.totalorder %s612, 63
      %s614 = scalar_select %p613, %s612, 63
      %s615 = smul.addr %s614, 4
      %s616 = scalar_lea.vmem %s4, %s615
      // Predicated region
      $region37: #{_basic_conv_forward.1} parent=35 // pred_check
        %p617 = pneg %p122
      $region38: #{_basic_conv_forward.1} parent=35 // pred_check_branch
        %619 = sbr.rel (%p617) target = $region40
      $region39: #{_basic_conv_forward.1} parent=35 // pred_region
        %s620 = smul.u32 32, %s15
      $region40: #{_basic_conv_forward.1} parent=35 // pred_fallthru
        _
    $region36: #{_basic_conv_forward.1} parent=5 // pred_fallthru
      _
    %p621 = scmp.le.s32.totalorder 2, %s10
    // Predicated region
    $region41: #{_basic_conv_forward.1} parent=5 // pred_check
      %p622 = pneg %p621
    $region42: #{_basic_conv_forward.1} parent=5 // pred_check_branch
      %624 = sbr.rel (%p622) target = $region44
    $region43: #{_basic_conv_forward.1} parent=5 // pred_region
      %s625 = ssub.s32 %s10, 2
      // Predicated region
      $region45: #{_basic_conv_forward.1} parent=43 // pred_check
        %p626 = pneg %p128
      $region46: #{_basic_conv_forward.1} parent=43 // pred_check_branch
        %628 = sbr.rel (%p626) target = $region48
      $region47: #{_basic_conv_forward.1} parent=43 // pred_region
        %s629 = smul.u32 32, %s16
        %p630 = scmp.lt.s32.totalorder %s629, 63
        %s631 = scalar_select %p630, %s629, 63
        %s632 = smul.addr %s631, 4
        %s633 = scalar_lea.vmem %s4, %s632
      $region48: #{_basic_conv_forward.1} parent=43 // pred_fallthru
        _
    $region44: #{_basic_conv_forward.1} parent=5 // pred_fallthru
      _
  $region6: #{_basic_conv_forward.1} parent=0 // loop_footer
    %s14 = sadd.s32 1, %s10
  $region7: #{_basic_conv_forward.1} parent=0 // loop_footer_branch
    %9 = sbr.rel target = $region3
  $region8: #{_basic_conv_forward.1} parent=0 // loop_exit
    _

</llo_original>
